<compile_context>
chip_gen: v6e
topology: v6e:2x2x1
jax: 0.10.0
libtpu: 0.0.40
codegen_flags: <defaults>
</compile_context>

<pallas_src>
import functools

import jax
import jax.numpy as jnp
from jax import lax
from jax.experimental import pallas as pl
from jax.experimental.pallas import tpu as pltpu


_LANE = 128          # TPU lane width: pad the head dim to this for lane-dense tiles
_MASK_VALUE = -1e30  # finite large-negative mask (never produces inf-inf -> NaN)


def _head_kernel(xq_ref, xkv_ref, wq_ref, wkv_ref, o_ref,
                 q_scr, acc_scr, m_scr, l_scr,
                 *, compute_dtype, approx_recip):
    """One (batch-block, kv-tile) grid step of a single causal attention head.

    xq_ref : (bblk, T,   C)  activations for the query rows (same block every kv step)
    xkv_ref: (bblk, tkv, C)  activations for this key/value tile
    wq_ref : (C, Hp)         query weight, pre-scaled by C**-0.5, zero-padded to Hp lanes
    wkv_ref: (C, 2*Hp)       [key | value] weights, each zero-padded to Hp lanes
    o_ref  : (bblk, T, Hp)   (lane-dense default) or (bblk, T, H)
    q_scr  : (bblk, T, Hp)   q projection, computed once per batch block
    acc_scr: (bblk, T, Hp)   f32 online-softmax numerator
    m_scr, l_scr: (bblk, T, 1) f32 running max / denominator
    """
    kv = pl.program_id(1)
    bblk, t, c = xq_ref.shape
    tkv = xkv_ref.shape[1]
    hp = wq_ref.shape[1]

    # ---- once per batch block: q projection (scale already folded into wq) ----
    @pl.when(kv == 0)
    def _init():
        xq = xq_ref[...].reshape(bblk * t, c).astype(compute_dtype)
        q = jnp.dot(xq, wq_ref[...].astype(compute_dtype),
                    preferred_element_type=jnp.float32)            # (bblk*t, Hp)
        q_scr[...] = q.reshape(bblk, t, hp).astype(q_scr.dtype)
        m_scr[...] = jnp.full(m_scr.shape, _MASK_VALUE, m_scr.dtype)
        l_scr[...] = jnp.zeros(l_scr.shape, l_scr.dtype)
        acc_scr[...] = jnp.zeros(acc_scr.shape, acc_scr.dtype)

    # ---- k/v projection for this kv tile: one matmul, lane-tile-aligned slices ----
    xkv = xkv_ref[...].reshape(bblk * tkv, c).astype(compute_dtype)
    kvp = jnp.dot(xkv, wkv_ref[...].astype(compute_dtype),
                  preferred_element_type=jnp.float32).reshape(bblk, tkv, 2 * hp)
    k = kvp[:, :, :hp].astype(compute_dtype)       # slice offset 0   (aligned)
    v = kvp[:, :, hp:].astype(compute_dtype)       # slice offset 128 (aligned)

    # ---- scores: contract over the padded head dim (zero padding is exact) ----
    q = q_scr[...].astype(compute_dtype)
    s = jnp.einsum('bqd,bkd->bqk', q, k,
                   preferred_element_type=jnp.float32)             # (bblk, t, tkv) f32

    # ---- causal mask from ONE 2-D iota pair, broadcast over the batch dim ----
    row = lax.broadcasted_iota(jnp.int32, (t, tkv), 0)
    col = lax.broadcasted_iota(jnp.int32, (t, tkv), 1) + kv * tkv
    s = jnp.where((col <= row)[None, :, :], s, _MASK_VALUE)

    # ---- online softmax update (single kv step == plain softmax) ----
    m_prev = m_scr[...]
    m_new = jnp.maximum(m_prev, jnp.max(s, axis=-1, keepdims=True))
    alpha = jnp.exp(m_prev - m_new)
    p = jnp.exp(s - m_new)
    l_scr[...] = alpha * l_scr[...] + jnp.sum(p, axis=-1, keepdims=True)
    acc_scr[...] = alpha * acc_scr[...] + jnp.einsum(
        'bqk,bkd->bqd', p.astype(compute_dtype), v,
        preferred_element_type=jnp.float32)
    m_scr[...] = m_new

    # dropout: eval-mode identity (nn.Dropout is a no-op in eval) -> nothing to do.

    # ---- finalize: normalize and store (lane-dense when o_ref last dim == Hp) ----
    @pl.when(kv == pl.num_programs(1) - 1)
    def _finalize():
        if approx_recip:
            out = acc_scr[...] * pl.reciprocal(l_scr[...], approx=True)
        else:
            out = acc_scr[...] / l_scr[...]
        o_ref[...] = out[:, :, :o_ref.shape[-1]].astype(o_ref.dtype)


# ----------------------------- wrapper helpers -----------------------------

def _round_up(n, m):
    return ((n + m - 1) // m) * m


def _vmem_capacity_bytes():
    try:
        return int(pltpu.get_tpu_info().vmem_capacity_bytes)
    except Exception:
        return 64 * 1024 * 1024      # conservative fallback: v7x per-core VMEM


def _pick_kv_block(T, kv_block=None):
    if kv_block is not None:
        assert T % kv_block == 0 and (kv_block % 8 == 0 or kv_block == T)
        return kv_block
    if T <= 512:
        return T                      # single kv step: exact plain softmax
    for cand in (512, 256, 128, 64, 32, 16, 8):
        if T % cand == 0:
            return cand
    return T


def _per_batch_vmem_bytes(T, tkv, C, hp, out_h, x_item, cd_item):
    b = 2 * T * C * x_item            # x (query rows), double-buffered
    b += 2 * tkv * C * x_item         # x (kv tile), double-buffered
    b += 2 * T * out_h * x_item       # output block, double-buffered
    b += T * hp * cd_item             # q scratch
    b += T * hp * 4                   # f32 accumulator scratch
    b += 2 * T * 4                    # running max / denom scratch
    b += 3 * T * tkv * 4              # scores / exp / mask-select temporaries
    b += 3 * tkv * 2 * hp * 4         # kv projection result + casted k, v
    b += (T + tkv) * C * cd_item      # casted activation copies
    return b


def _pick_batch_block(B, per_b_bytes, budget_bytes):
    bblk = max(1, min(B, budget_bytes // max(per_b_bytes, 1)))
    if B >= 2:
        # keep >=2 grid steps on the parallel axis so 2-TC parts (v7x) use both cores
        bblk = max(1, min(bblk, B // 2))
    while B % bblk:
        bblk -= 1
    return bblk


def head_forward(x, wk, wq, wv, *, compute_dtype=jnp.bfloat16,
                 batch_block=None, kv_block=None, lane_dense_out=True,
                 approx_reciprocal=True):
    """Single causal self-attention head, matching PyTorch Head.forward (eval mode).

    x          : (B, T, C) — used in its incoming dtype (pass bf16 from the producer
                 to halve the dominant HBM->VMEM DMA; no wrapper astype is added).
    wk/wq/wv   : (C, H) == PyTorch nn.Linear(C, H, bias=False).weight.T
    returns    : (B, T, H) in x.dtype
    """
    B, T, C = x.shape
    H = wq.shape[1]
    scale = float(C) ** -0.5          # C = n_embd, exactly as in the PyTorch module

    hp = _round_up(max(H, 1), _LANE)
    cd = compute_dtype
    cd_item = jnp.dtype(cd).itemsize
    x_item = jnp.dtype(x.dtype).itemsize

    # Fold the softmax scale into wq and zero-pad each head weight to Hp lanes.
    # (One-time wrapper ops; the zero columns contribute exactly 0 to every dot.)
    wq_p = jnp.zeros((C, hp), cd).at[:, :H].set((wq * scale).astype(cd))
    wk_p = jnp.zeros((C, hp), cd).at[:, :H].set(wk.astype(cd))
    wv_p = jnp.zeros((C, hp), cd).at[:, :H].set(wv.astype(cd))
    w_kv = jnp.concatenate([wk_p, wv_p], axis=1)                   # (C, 2*Hp)

    tkv = _pick_kv_block(T, kv_block)
    out_h = hp if lane_dense_out else H

    # --- generation-aware VMEM budgeting (v7x: 64 MiB; v5e/v6e: 128 MiB) ---
    cap = _vmem_capacity_bytes()
    vmem_cap = int(cap * 0.8)                       # headroom below physical VMEM
    per_b = _per_batch_vmem_bytes(T, tkv, C, hp, out_h, x_item, cd_item)
    budget = min(vmem_cap // 3, 48 * 1024 * 1024)
    bblk = batch_block or _pick_batch_block(B, per_b, budget)

    w_bytes = 2 * (C * hp + C * 2 * hp) * cd_item   # resident weights, double-buffered
    vmem_limit = int(min(vmem_cap,
                         max(32 * 1024 * 1024, int(1.5 * (bblk * per_b + w_bytes)))))

    grid = (B // bblk, T // tkv)
    kernel = functools.partial(_head_kernel, compute_dtype=cd,
                               approx_recip=approx_reciprocal)

    out = pl.pallas_call(
        kernel,
        out_shape=jax.ShapeDtypeStruct((B, T, out_h), x.dtype),
        grid_spec=pltpu.PrefetchScalarGridSpec(
            num_scalar_prefetch=0,
            grid=grid,
            in_specs=[
                pl.BlockSpec((bblk, T, C), lambda b, kv: (b, 0, 0)),     # x (queries)
                pl.BlockSpec((bblk, tkv, C), lambda b, kv: (b, kv, 0)),  # x (kv tile)
                pl.BlockSpec((C, hp), lambda b, kv: (0, 0)),             # wq (scaled+padded)
                pl.BlockSpec((C, 2 * hp), lambda b, kv: (0, 0)),         # [wk | wv] padded
            ],
            out_specs=pl.BlockSpec((bblk, T, out_h), lambda b, kv: (b, 0, 0)),
            scratch_shapes=[
                pltpu.VMEM((bblk, T, hp), cd),            # q
                pltpu.VMEM((bblk, T, hp), jnp.float32),   # acc
                pltpu.VMEM((bblk, T, 1), jnp.float32),    # running max
                pltpu.VMEM((bblk, T, 1), jnp.float32),    # running denom
            ],
        ),
        compiler_params=pltpu.CompilerParams(
            dimension_semantics=("parallel", "arbitrary"),
            vmem_limit_bytes=vmem_limit,
        ),
    )(x, x, wq_p, w_kv)

    return out[..., :H] if out_h != H else out


def _reference(x, wk, wq, wv):
    """Pure-JAX f32 reference matching the PyTorch forward."""
    B, T, C = x.shape
    xf = x.astype(jnp.float32)
    k = xf @ wk
    q = xf @ wq
    v = xf @ wv
    wei = (q @ jnp.swapaxes(k, -2, -1)) * (C ** -0.5)
    mask = jnp.tril(jnp.ones((T, T), dtype=bool))
    wei = jnp.where(mask, wei, -jnp.inf)
    wei = jax.nn.softmax(wei, axis=-1)
    return wei @ v


if __name__ == "__main__":
    # Shapes consistent with the module: batch=2, block_size T=8, n_embd C=32,
    # head_size H=16, dropout=0.0 (eval mode).
    B, T, C, H = 2, 8, 32, 16

    key = jax.random.PRNGKey(0)
    kx, kk, kq, kv, kx2 = jax.random.split(key, 5)

    x = jax.random.normal(kx, (B, T, C), dtype=jnp.float32)
    # deterministic "nn.Linear(n_embd, head_size, bias=False)" weights,
    # stored transposed as (C, H) so the kernel computes x @ W.
    wk = jax.random.normal(kk, (C, H), dtype=jnp.float32) * 0.02
    wq = jax.random.normal(kq, (C, H), dtype=jnp.float32) * 0.02
    wv = jax.random.normal(kv, (C, H), dtype=jnp.float32) * 0.02

    ref = _reference(x, wk, wq, wv)

    # f32-operand path: matches the PyTorch module (only deviation is the
    # approximate EUP reciprocal in the softmax normalization).
    out_f32 = jax.block_until_ready(
        head_forward(x, wk, wq, wv, compute_dtype=jnp.float32))
    assert out_f32.shape == (B, T, H)
    assert jnp.allclose(out_f32, ref, atol=5e-3, rtol=5e-3), \
        float(jnp.max(jnp.abs(out_f32 - ref)))

    # Optimized bf16-MXU path (f32 accumulation, f32 softmax).
    out_bf16 = jax.block_until_ready(
        head_forward(x, wk, wq, wv, compute_dtype=jnp.bfloat16))
    assert out_bf16.shape == (B, T, H)
    assert jnp.allclose(out_bf16, ref, atol=3e-2, rtol=3e-2), \
        float(jnp.max(jnp.abs(out_bf16 - ref)))

    # KV-tiled online-softmax (flash) path exercised with multiple kv tiles.
    T2 = 64
    x2 = jax.random.normal(kx2, (B, T2, C), dtype=jnp.float32)
    ref2 = _reference(x2, wk, wq, wv)
    out_flash = jax.block_until_ready(
        head_forward(x2, wk, wq, wv, compute_dtype=jnp.float32, kv_block=16))
    assert out_flash.shape == (B, T2, H)
    assert jnp.allclose(out_flash, ref2, atol=5e-3, rtol=5e-3), \
        float(jnp.max(jnp.abs(out_flash - ref2)))

    print("KERNEL_OK")
</pallas_src>

<mosaic_0001>
module attributes {stable_mosaic.version = 11 : i64} {
  func.func @_head_kernel(%arg0: i32, %arg1: i32, %arg2: memref<1x8x32xf32, #tpu.memory_space<vmem>>, %arg3: memref<1x8x32xf32, #tpu.memory_space<vmem>>, %arg4: memref<32x128xf32, #tpu.memory_space<vmem>>, %arg5: memref<32x256xf32, #tpu.memory_space<vmem>>, %arg6: memref<1x8x128xf32, #tpu.memory_space<vmem>>, %arg7: memref<1x8x128xf32, #tpu.memory_space<vmem>>, %arg8: memref<1x8x128xf32, #tpu.memory_space<vmem>>, %arg9: memref<1x8x1xf32, #tpu.memory_space<vmem>>, %arg10: memref<1x8x1xf32, #tpu.memory_space<vmem>>) attributes {dimension_semantics = [#tpu.dimension_semantics<parallel>, #tpu.dimension_semantics<arbitrary>], iteration_bounds = array<i64: 2, 1>, scalar_prefetch = 0 : i64, scratch_operands = 4 : i64, tpu.core_type = #tpu.core_type<tc>, window_params = [{transform_indices = @transform_0, window_bounds = array<i64: 1, 8, 32>}, {transform_indices = @transform_1, window_bounds = array<i64: 1, 8, 32>}, {pipeline_mode = #tpu.pipeline_mode<synchronous>, transform_indices = @transform_2, window_bounds = array<i64: 32, 128>}, {pipeline_mode = #tpu.pipeline_mode<synchronous>, transform_indices = @transform_3, window_bounds = array<i64: 32, 256>}, {transform_indices = @transform_4, window_bounds = array<i64: 1, 8, 128>}]} {
    %c0_i32 = arith.constant 0 : i32
    %0 = arith.cmpi eq, %arg1, %c0_i32 : i32
    %1 = arith.extui %0 : i1 to i32
    %c0_i32_0 = arith.constant 0 : i32
    %2 = arith.cmpi ne, %1, %c0_i32_0 : i32
    scf.if %2 {
      %c0_33 = arith.constant 0 : index
      %c0_34 = arith.constant 0 : index
      %c0_35 = arith.constant 0 : index
      %46 = vector.load %arg2[%c0_33, %c0_34, %c0_35] : memref<1x8x32xf32, #tpu.memory_space<vmem>>, vector<1x8x32xf32>
      %47 = vector.shape_cast %46 : vector<1x8x32xf32> to vector<8x32xf32>
      %c0_36 = arith.constant 0 : index
      %c0_37 = arith.constant 0 : index
      %48 = vector.load %arg4[%c0_36, %c0_37] : memref<32x128xf32, #tpu.memory_space<vmem>>, vector<32x128xf32>
      %cst_38 = arith.constant dense<0.000000e+00> : vector<8x128xf32>
      %49 = tpu.matmul %47, %48, %cst_38 {dimension_numbers = #tpu.dot_dimension_numbers<[1], [0], [0], [1], [0, 0, 1, 1], [], []>} : vector<8x32xf32>, vector<32x128xf32>, vector<8x128xf32> -> vector<8x128xf32>
      %50 = vector.shape_cast %49 : vector<8x128xf32> to vector<1x8x128xf32>
      %c0_39 = arith.constant 0 : index
      %c0_40 = arith.constant 0 : index
      %c0_41 = arith.constant 0 : index
      %51 = vector.load %arg7[%c0_39, %c0_40, %c0_41] : memref<1x8x128xf32, #tpu.memory_space<vmem>>, vector<1x8x128xf32>
      tpu.vector_store %arg7[%c0_39, %c0_40, %c0_41], %50 {strides = array<i32>} : memref<1x8x128xf32, #tpu.memory_space<vmem>>, vector<1x8x128xf32>,
      %cst_42 = arith.constant -1.000000e+30 : f32
      %52 = vector.broadcast %cst_42 : f32 to vector<1x8x1xf32>
      %c0_43 = arith.constant 0 : index
      %c0_44 = arith.constant 0 : index
      %c0_45 = arith.constant 0 : index
      %53 = vector.load %arg9[%c0_43, %c0_44, %c0_45] : memref<1x8x1xf32, #tpu.memory_space<vmem>>, vector<1x8x1xf32>
      tpu.vector_store %arg9[%c0_43, %c0_44, %c0_45], %52 {strides = array<i32>} : memref<1x8x1xf32, #tpu.memory_space<vmem>>, vector<1x8x1xf32>,
      %cst_46 = arith.constant 0.000000e+00 : f32
      %54 = vector.broadcast %cst_46 : f32 to vector<1x8x1xf32>
      %c0_47 = arith.constant 0 : index
      %c0_48 = arith.constant 0 : index
      %c0_49 = arith.constant 0 : index
      %55 = vector.load %arg10[%c0_47, %c0_48, %c0_49] : memref<1x8x1xf32, #tpu.memory_space<vmem>>, vector<1x8x1xf32>
      tpu.vector_store %arg10[%c0_47, %c0_48, %c0_49], %54 {strides = array<i32>} : memref<1x8x1xf32, #tpu.memory_space<vmem>>, vector<1x8x1xf32>,
      %cst_50 = arith.constant 0.000000e+00 : f32
      %56 = vector.broadcast %cst_50 : f32 to vector<1x8x128xf32>
      %c0_51 = arith.constant 0 : index
      %c0_52 = arith.constant 0 : index
      %c0_53 = arith.constant 0 : index
      %57 = vector.load %arg8[%c0_51, %c0_52, %c0_53] : memref<1x8x128xf32, #tpu.memory_space<vmem>>, vector<1x8x128xf32>
      tpu.vector_store %arg8[%c0_51, %c0_52, %c0_53], %56 {strides = array<i32>} : memref<1x8x128xf32, #tpu.memory_space<vmem>>, vector<1x8x128xf32>,
    } else {
    }
    %c0 = arith.constant 0 : index
    %c0_1 = arith.constant 0 : index
    %c0_2 = arith.constant 0 : index
    %3 = vector.load %arg3[%c0, %c0_1, %c0_2] : memref<1x8x32xf32, #tpu.memory_space<vmem>>, vector<1x8x32xf32>
    %4 = vector.shape_cast %3 : vector<1x8x32xf32> to vector<8x32xf32>
    %c0_3 = arith.constant 0 : index
    %c0_4 = arith.constant 0 : index
    %5 = vector.load %arg5[%c0_3, %c0_4] : memref<32x256xf32, #tpu.memory_space<vmem>>, vector<32x256xf32>
    %cst = arith.constant dense<0.000000e+00> : vector<8x256xf32>
    %6 = tpu.matmul %4, %5, %cst {dimension_numbers = #tpu.dot_dimension_numbers<[1], [0], [0], [1], [0, 0, 1, 1], [], []>} : vector<8x32xf32>, vector<32x256xf32>, vector<8x256xf32> -> vector<8x256xf32>
    %7 = vector.shape_cast %6 : vector<8x256xf32> to vector<1x8x256xf32>
    %8 = vector.extract_strided_slice %7 {offsets = [0, 0, 0], sizes = [1, 8, 128], strides = [1, 1, 1]} : vector<1x8x256xf32> to vector<1x8x128xf32>
    %9 = vector.extract_strided_slice %7 {offsets = [0, 0, 128], sizes = [1, 8, 128], strides = [1, 1, 1]} : vector<1x8x256xf32> to vector<1x8x128xf32>
    %c0_5 = arith.constant 0 : index
    %c0_6 = arith.constant 0 : index
    %c0_7 = arith.constant 0 : index
    %10 = vector.load %arg7[%c0_5, %c0_6, %c0_7] : memref<1x8x128xf32, #tpu.memory_space<vmem>>, vector<1x8x128xf32>
    "tpu.trace_start"() <{level = 10 : i32, message = "bqd,bkd->bqk"}> : () -> ()
    %cst_8 = arith.constant dense<0.000000e+00> : vector<1x8x8xf32>
    %11 = tpu.matmul %10, %8, %cst_8 {dimension_numbers = #tpu.dot_dimension_numbers<[2], [2], [1], [1], [0, 0, 0, 1, 1, 1], [0], [0]>} : vector<1x8x128xf32>, vector<1x8x128xf32>, vector<1x8x8xf32> -> vector<1x8x8xf32>
    "tpu.trace_stop"() : () -> ()
    %12 = tpu.iota {dimensions = array<i32: 0>} : vector<8x8xi32>
    %13 = tpu.iota {dimensions = array<i32: 1>} : vector<8x8xi32>
    %c8_i32 = arith.constant 8 : i32
    %14 = arith.muli %arg1, %c8_i32 : i32
    %15 = vector.broadcast %14 : i32 to vector<8x8xi32>
    %16 = arith.addi %13, %15 : vector<8x8xi32>
    %17 = arith.cmpi sle, %16, %12 : vector<8x8xi32>
    %18 = vector.shape_cast %17 : vector<8x8xi1> to vector<1x8x8xi1>
    %cst_9 = arith.constant -1.000000e+30 : f32
    %19 = vector.broadcast %cst_9 : f32 to vector<1x8x8xf32>
    %20 = arith.select %18, %11, %19 : vector<1x8x8xi1>, vector<1x8x8xf32>
    %c0_10 = arith.constant 0 : index
    %c0_11 = arith.constant 0 : index
    %c0_12 = arith.constant 0 : index
    %21 = vector.load %arg9[%c0_10, %c0_11, %c0_12] : memref<1x8x1xf32, #tpu.memory_space<vmem>>, vector<1x8x1xf32>
    %cst_13 = arith.constant dense<0xFF800000> : vector<1x8xf32>
    %22 = vector.multi_reduction <maximumf>, %20, %cst_13 [2] : vector<1x8x8xf32> to vector<1x8xf32>
    %23 = vector.shape_cast %22 : vector<1x8xf32> to vector<1x8x1xf32>
    %24 = arith.maximumf %21, %23 : vector<1x8x1xf32>
    %25 = arith.subf %21, %24 : vector<1x8x1xf32>
    %26 = math.exp %25 : vector<1x8x1xf32>
    %27 = vector.broadcast %24 : vector<1x8x1xf32> to vector<1x8x8xf32>
    %28 = arith.subf %20, %27 : vector<1x8x8xf32>
    %29 = math.exp %28 : vector<1x8x8xf32>
    %c0_14 = arith.constant 0 : index
    %c0_15 = arith.constant 0 : index
    %c0_16 = arith.constant 0 : index
    %30 = vector.load %arg10[%c0_14, %c0_15, %c0_16] : memref<1x8x1xf32, #tpu.memory_space<vmem>>, vector<1x8x1xf32>
    %31 = arith.mulf %26, %30 : vector<1x8x1xf32>
    %cst_17 = arith.constant dense<0.000000e+00> : vector<1x8xf32>
    %32 = vector.multi_reduction <add>, %29, %cst_17 [2] : vector<1x8x8xf32> to vector<1x8xf32>
    %33 = vector.shape_cast %32 : vector<1x8xf32> to vector<1x8x1xf32>
    %34 = arith.addf %31, %33 : vector<1x8x1xf32>
    %c0_18 = arith.constant 0 : index
    %c0_19 = arith.constant 0 : index
    %c0_20 = arith.constant 0 : index
    %35 = vector.load %arg10[%c0_18, %c0_19, %c0_20] : memref<1x8x1xf32, #tpu.memory_space<vmem>>, vector<1x8x1xf32>
    tpu.vector_store %arg10[%c0_18, %c0_19, %c0_20], %34 {strides = array<i32>} : memref<1x8x1xf32, #tpu.memory_space<vmem>>, vector<1x8x1xf32>,
    %c0_21 = arith.constant 0 : index
    %c0_22 = arith.constant 0 : index
    %c0_23 = arith.constant 0 : index
    %36 = vector.load %arg8[%c0_21, %c0_22, %c0_23] : memref<1x8x128xf32, #tpu.memory_space<vmem>>, vector<1x8x128xf32>
    %37 = vector.broadcast %26 : vector<1x8x1xf32> to vector<1x8x128xf32>
    %38 = arith.mulf %37, %36 : vector<1x8x128xf32>
    "tpu.trace_start"() <{level = 10 : i32, message = "bqk,bkd->bqd"}> : () -> ()
    %cst_24 = arith.constant dense<0.000000e+00> : vector<1x8x128xf32>
    %39 = tpu.matmul %29, %9, %cst_24 {dimension_numbers = #tpu.dot_dimension_numbers<[2], [1], [1], [2], [0, 0, 0, 1, 1, 2], [0], [0]>} : vector<1x8x8xf32>, vector<1x8x128xf32>, vector<1x8x128xf32> -> vector<1x8x128xf32>
    "tpu.trace_stop"() : () -> ()
    %40 = arith.addf %38, %39 : vector<1x8x128xf32>
    %c0_25 = arith.constant 0 : index
    %c0_26 = arith.constant 0 : index
    %c0_27 = arith.constant 0 : index
    %41 = vector.load %arg8[%c0_25, %c0_26, %c0_27] : memref<1x8x128xf32, #tpu.memory_space<vmem>>, vector<1x8x128xf32>
    tpu.vector_store %arg8[%c0_25, %c0_26, %c0_27], %40 {strides = array<i32>} : memref<1x8x128xf32, #tpu.memory_space<vmem>>, vector<1x8x128xf32>,
    %c0_28 = arith.constant 0 : index
    %c0_29 = arith.constant 0 : index
    %c0_30 = arith.constant 0 : index
    %42 = vector.load %arg9[%c0_28, %c0_29, %c0_30] : memref<1x8x1xf32, #tpu.memory_space<vmem>>, vector<1x8x1xf32>
    tpu.vector_store %arg9[%c0_28, %c0_29, %c0_30], %24 {strides = array<i32>} : memref<1x8x1xf32, #tpu.memory_space<vmem>>, vector<1x8x1xf32>,
    %c0_i32_31 = arith.constant 0 : i32
    %43 = arith.cmpi eq, %arg1, %c0_i32_31 : i32
    %44 = arith.extui %43 : i1 to i32
    %c0_i32_32 = arith.constant 0 : i32
    %45 = arith.cmpi ne, %44, %c0_i32_32 : i32
    scf.if %45 {
      %c0_33 = arith.constant 0 : index
      %c0_34 = arith.constant 0 : index
      %c0_35 = arith.constant 0 : index
      %46 = vector.load %arg8[%c0_33, %c0_34, %c0_35] : memref<1x8x128xf32, #tpu.memory_space<vmem>>, vector<1x8x128xf32>
      %c0_36 = arith.constant 0 : index
      %c0_37 = arith.constant 0 : index
      %c0_38 = arith.constant 0 : index
      %47 = vector.load %arg10[%c0_36, %c0_37, %c0_38] : memref<1x8x1xf32, #tpu.memory_space<vmem>>, vector<1x8x1xf32>
      %48 = tpu.reciprocal %47 {approx = true} : vector<1x8x1xf32> -> vector<1x8x1xf32>
      %49 = vector.broadcast %48 : vector<1x8x1xf32> to vector<1x8x128xf32>
      %50 = arith.mulf %46, %49 : vector<1x8x128xf32>
      %c0_39 = arith.constant 0 : index
      %c0_40 = arith.constant 0 : index
      %c0_41 = arith.constant 0 : index
      %51 = vector.load %arg6[%c0_39, %c0_40, %c0_41] : memref<1x8x128xf32, #tpu.memory_space<vmem>>, vector<1x8x128xf32>
      tpu.vector_store %arg6[%c0_39, %c0_40, %c0_41], %50 {strides = array<i32>} : memref<1x8x128xf32, #tpu.memory_space<vmem>>, vector<1x8x128xf32>,
    } else {
    }
    return
  }
  func.func @transform_0(%arg0: i32, %arg1: i32) -> (i32, i32, i32) {
    %c0_i32 = arith.constant 0 : i32
    %c0_i32_0 = arith.constant 0 : i32
    %c0_i32_1 = arith.constant 0 : i32
    return %arg0, %c0_i32, %c0_i32_0 : i32, i32, i32
  }
  func.func @transform_1(%arg0: i32, %arg1: i32) -> (i32, i32, i32) {
    %c0_i32 = arith.constant 0 : i32
    %c0_i32_0 = arith.constant 0 : i32
    return %arg0, %arg1, %c0_i32 : i32, i32, i32
  }
  func.func @transform_2(%arg0: i32, %arg1: i32) -> (i32, i32) {
    %c0_i32 = arith.constant 0 : i32
    %c0_i32_0 = arith.constant 0 : i32
    %c0_i32_1 = arith.constant 0 : i32
    return %c0_i32, %c0_i32_0 : i32, i32
  }
  func.func @transform_3(%arg0: i32, %arg1: i32) -> (i32, i32) {
    %c0_i32 = arith.constant 0 : i32
    %c0_i32_0 = arith.constant 0 : i32
    %c0_i32_1 = arith.constant 0 : i32
    return %c0_i32, %c0_i32_0 : i32, i32
  }
  func.func @transform_4(%arg0: i32, %arg1: i32) -> (i32, i32, i32) {
    %c0_i32 = arith.constant 0 : i32
    %c0_i32_0 = arith.constant 0 : i32
    %c0_i32_1 = arith.constant 0 : i32
    return %arg0, %c0_i32, %c0_i32_0 : i32, i32, i32
  }
}

</mosaic_0001>

<llo_original>
// kernel: tpu_custom_call.1
$region0: #{tpu_custom_call.1}
  #allocation0 [shape = 'u32[]', space=smem, size = 0x4, offset = 0x4, fixed_abs, tag = 'smem constant byte address 0x4 - core index']
  #allocation1 [shape = 'u32[144,128]{1,0:T(1,128)}', space=vmem, size = 0x12000, scoped, tag = 'internal scratch']
  #allocation2 [shape = 'f32[1,8,128]{2,1,0:T(8,128)}', space=vmem, size = 0x1000, scoped, tag = 'scratch operand']
  #allocation3 [shape = 'f32[1,8,128]{2,1,0:T(8,128)}', space=vmem, size = 0x1000, scoped, tag = 'scratch operand']
  #allocation4 [shape = 'f32[1,8,1]{2,1,0:T(8,128)}', space=vmem, size = 0x1000, scoped, tag = 'scratch operand']
  #allocation5 [shape = 'f32[1,8,1]{2,1,0:T(8,128)}', space=vmem, size = 0x1000, scoped, tag = 'scratch operand']
  %s0 = inlined_call_operand.hbm [shape: f32[2,8,32], index: 0, kind: input, shape index: {}]
  %s1 = inlined_call_operand.hbm [shape: f32[2,8,32], index: 1, kind: input, shape index: {}]
  %s2 = inlined_call_operand.hbm [shape: f32[32,128], index: 2, kind: input, shape index: {}]
  %s3 = inlined_call_operand.hbm [shape: f32[32,256], index: 3, kind: input, shape index: {}]
  %s4 = inlined_call_operand.hbm [shape: f32[2,8,128], index: 4, kind: output, shape index: {}]
  %s5 = sld [smem:[#allocation0]]
  $region73: #{tpu_custom_call.1} parent=0
    _
  %s7 = ssub.s32 1, %s5
  %s8 = scalar_select 0, %s7, %s5
  $region1: #{tpu_custom_call.1} parent=0
    #allocation6 [shape = 'u8[8192]{0}', space=vmem, size = 0x2000, scoped, tag = 'input window, operand 0']
    #allocation7 [shape = 's32[2]{0}', space=sflag, size = 0x8, scoped, tag = 'scoped memory for tpu_custom_call.1']
    #allocation8 [shape = 's32[2]{0}', space=sflag, size = 0x8, scoped, tag = 'scoped memory for tpu_custom_call.1']
    #allocation9 [shape = 'u8[8192]{0}', space=vmem, size = 0x2000, scoped, tag = 'input window, operand 1']
    #allocation10 [shape = 's32[2]{0}', space=sflag, size = 0x8, scoped, tag = 'scoped memory for tpu_custom_call.1']
    #allocation11 [shape = 'u8[16384]{0}', space=vmem, size = 0x4000, scoped, tag = 'input window, operand 2, single buffered']
    #allocation12 [shape = 'u8[32768]{0}', space=vmem, size = 0x8000, scoped, tag = 'input window, operand 3, single buffered']
    #allocation13 [shape = 's32[1]{0}', space=sflag, size = 0x4, scoped, tag = 'scoped memory for tpu_custom_call.1']
    #allocation14 [shape = 'u8[8192]{0}', space=vmem, size = 0x2000, scoped, tag = 'output window, operand 0']
    %9 = vsyncpa [#allocation7], 0
    %s10 = scalar_lea.sflag [#allocation7], 1
    %11 = vsyncpa %s10, 0
    %12 = vsyncpa [#allocation10], 0
    %s13 = scalar_lea.sflag [#allocation10], 1
    %14 = vsyncpa %s13, 0
    %15 = vsyncpa [#allocation13], 0
    %16 = vsyncpa [#allocation8], 0
    %s17 = scalar_lea.sflag [#allocation8], 1
    %18 = vsyncpa %s17, 0
    loop: start=0, step=1, limit=4
    $region2: #{tpu_custom_call.1} parent=1 // loop_pre_header
      _
    $region3: #{tpu_custom_call.1} parent=1 // loop_header
      %s20 = sphi 0, %s24
      %p21 = scmp.ge.s32.totalorder %s20, 4
      %s27 = sphi 0, %s39
      %s28 = sphi 0, %s35
      %s29 = sphi 0, %s27
      %s30 = sphi 0, %s28
      %s31 = sphi 0, %s29
      %s32 = sphi 0, %s30
      %s42 = sphi 0, %s44
      %s45 = sphi 0, %s42
      %s46 = sphi 0, %s45
      %s62 = sphi 0, %s46
      %s70 = sphi 0, %s72
      %s73 = sphi 0, %s70
      %s74 = sphi 0, %s73
      %s90 = sphi 0, %s74
      %s94 = sphi 0, %s94
      %s96 = sphi 0, %s94
      %s97 = sphi 0, %s96
      %s111 = sphi 0, %s97
      %s115 = sphi 0, %s115
      %s117 = sphi 0, %s115
      %s118 = sphi 0, %s117
      %s132 = sphi 0, %s118
      %s138 = sphi 0, %s140
      %s141 = sphi 0, %s138
      %s142 = sphi 0, %s141
      %s158 = sphi 0, %s142
    $region4: #{tpu_custom_call.1} parent=1 // loop_header_branch
      %23 = sbr.rel (%p21) target = $region8
    $region5: #{tpu_custom_call.1} parent=1 // loop_body
      %s25 = ssub.s32 %s20, 1
      %s26 = ssub.s32 %s20, 2
      %s33 = sadd.s32 1, %s28
      %p34 = scmp.ge.s32.totalorder %s33, 1
      %s35 = scalar_select %p34, 0, %s33
      %s36 = sadd.s32 1, %s27
      %s37 = scalar_select %p34, %s36, %s27
      %p38 = scmp.ge.s32.totalorder %s37, 2
      %s39 = scalar_select %p38, 0, %s37
      %s40 = ssub.s32 %s27, %s39
      %p41 = scmp.eq.s32.totalorder %s40, 0
      %s43 = sadd.s32 %s42, 1
      %s44 = scalar_select %p41, %s42, %s43
      %p47 = pneg %p41
      %p48 = scmp.eq.s32.totalorder %s20, 1
      %p49 = por %p47, %p48
      %p50 = scmp.ne.s32.totalorder %s42, %s45
      %p51 = scmp.eq.s32.totalorder %s20, 0
      %p52 = por %p50, %p51
      %p53 = scmp.ne.s32.totalorder %s42, %s45
      %p54 = scmp.eq.s32.totalorder %s25, 1
      %p55 = por %p53, %p54
      %p56 = scmp.ne.s32.totalorder %s45, %s46
      %p57 = scmp.eq.s32.totalorder %s25, 0
      %p58 = por %p56, %p57
      %p59 = scmp.ne.s32.totalorder %s45, %s46
      %p60 = scmp.eq.s32.totalorder %s26, 1
      %p61 = por %p59, %p60
      %p63 = scmp.ne.s32.totalorder %s46, %s62
      %p64 = scmp.eq.s32.totalorder %s26, 0
      %p65 = por %p63, %p64
      %s66 = ssub.s32 %s27, %s39
      %s67 = ssub.s32 %s28, %s35
      %s68 = sor.u32 %s66, %s67
      %p69 = scmp.eq.s32.totalorder %s68, 0
      %s71 = sadd.s32 %s70, 1
      %s72 = scalar_select %p69, %s70, %s71
      %p75 = pneg %p69
      %p76 = scmp.eq.s32.totalorder %s20, 1
      %p77 = por %p75, %p76
      %p78 = scmp.ne.s32.totalorder %s70, %s73
      %p79 = scmp.eq.s32.totalorder %s20, 0
      %p80 = por %p78, %p79
      %p81 = scmp.ne.s32.totalorder %s70, %s73
      %p82 = scmp.eq.s32.totalorder %s25, 1
      %p83 = por %p81, %p82
      %p84 = scmp.ne.s32.totalorder %s73, %s74
      %p85 = scmp.eq.s32.totalorder %s25, 0
      %p86 = por %p84, %p85
      %p87 = scmp.ne.s32.totalorder %s73, %s74
      %p88 = scmp.eq.s32.totalorder %s26, 1
      %p89 = por %p87, %p88
      %p91 = scmp.ne.s32.totalorder %s74, %s90
      %p92 = scmp.eq.s32.totalorder %s26, 0
      %p93 = por %p91, %p92
      %s95 = sadd.s32 %s94, 1
      %p98 = scmp.eq.s32.totalorder %s20, 1
      %p99 = scmp.ne.s32.totalorder %s94, %s96
      %p100 = scmp.eq.s32.totalorder %s20, 0
      %p101 = por %p99, %p100
      %p102 = scmp.ne.s32.totalorder %s94, %s96
      %p103 = scmp.eq.s32.totalorder %s25, 1
      %p104 = por %p102, %p103
      %p105 = scmp.ne.s32.totalorder %s96, %s97
      %p106 = scmp.eq.s32.totalorder %s25, 0
      %p107 = por %p105, %p106
      %p108 = scmp.ne.s32.totalorder %s96, %s97
      %p109 = scmp.eq.s32.totalorder %s26, 1
      %p110 = por %p108, %p109
      %p112 = scmp.ne.s32.totalorder %s97, %s111
      %p113 = scmp.eq.s32.totalorder %s26, 0
      %p114 = por %p112, %p113
      %s116 = sadd.s32 %s115, 1
      %p119 = scmp.eq.s32.totalorder %s20, 1
      %p120 = scmp.ne.s32.totalorder %s115, %s117
      %p121 = scmp.eq.s32.totalorder %s20, 0
      %p122 = por %p120, %p121
      %p123 = scmp.ne.s32.totalorder %s115, %s117
      %p124 = scmp.eq.s32.totalorder %s25, 1
      %p125 = por %p123, %p124
      %p126 = scmp.ne.s32.totalorder %s117, %s118
      %p127 = scmp.eq.s32.totalorder %s25, 0
      %p128 = por %p126, %p127
      %p129 = scmp.ne.s32.totalorder %s117, %s118
      %p130 = scmp.eq.s32.totalorder %s26, 1
      %p131 = por %p129, %p130
      %p133 = scmp.ne.s32.totalorder %s118, %s132
      %p134 = scmp.eq.s32.totalorder %s26, 0
      %p135 = por %p133, %p134
      %s136 = ssub.s32 %s27, %s39
      %p137 = scmp.eq.s32.totalorder %s136, 0
      %s139 = sadd.s32 %s138, 1
      %s140 = scalar_select %p137, %s138, %s139
      %p143 = pneg %p137
      %p144 = scmp.eq.s32.totalorder %s20, 1
      %p145 = por %p143, %p144
      %p146 = scmp.ne.s32.totalorder %s138, %s141
      %p147 = scmp.eq.s32.totalorder %s20, 0
      %p148 = por %p146, %p147
      %p149 = scmp.ne.s32.totalorder %s138, %s141
      %p150 = scmp.eq.s32.totalorder %s25, 1
      %p151 = por %p149, %p150
      %p152 = scmp.ne.s32.totalorder %s141, %s142
      %p153 = scmp.eq.s32.totalorder %s25, 0
      %p154 = por %p152, %p153
      %p155 = scmp.ne.s32.totalorder %s141, %s142
      %p156 = scmp.eq.s32.totalorder %s26, 1
      %p157 = por %p155, %p156
      %p159 = scmp.ne.s32.totalorder %s142, %s158
      %p160 = scmp.eq.s32.totalorder %s26, 0
      %p161 = por %p159, %p160
      %p162 = scmp.le.s32.totalorder 1, %s20
      %p163 = scmp.lt.s32.totalorder %s20, 3
      %p164 = pnand %p162, %p163
      %p165 = pneg %p164
      // Predicated region
      $region9: #{tpu_custom_call.1} parent=5 // pred_check
        _
      $region10: #{tpu_custom_call.1} parent=5 // pred_check_branch
        %167 = sbr.rel (%p164) target = $region12
      $region11: #{tpu_custom_call.1} parent=5 // pred_region
        %s168 = ssub.s32 %s20, 1
        // Predicated region
        $region13: #{tpu_custom_call.1} parent=11 // pred_check
          %p169 = pneg %p107
        $region14: #{tpu_custom_call.1} parent=11 // pred_check_branch
          %171 = sbr.rel (%p169) target = $region16
        $region15: #{tpu_custom_call.1} parent=11 // pred_region
          %s173 = ssub.s32 512, 512
          %174 = vsyncadd [#allocation10], %s173
          %s175 = sshll.u32 [#allocation11], 4
          %s176 = int_to_ptr.vmem [resolvable:$true] %s175
          %181 = dma.hbm_to_vmem [thread:$0]  %s2, 512, %s176, [#allocation10], 128, 128, 8
        $region16: #{tpu_custom_call.1} parent=11 // pred_fallthru
          _
        // Predicated region
        $region17: #{tpu_custom_call.1} parent=11 // pred_check
          %p182 = pneg %p128
        $region18: #{tpu_custom_call.1} parent=11 // pred_check_branch
          %184 = sbr.rel (%p182) target = $region20
        $region19: #{tpu_custom_call.1} parent=11 // pred_region
          %s186 = ssub.s32 1024, 1024
          %187 = vsyncadd [#allocation13], %s186
          %s188 = sshll.u32 [#allocation12], 4
          %s189 = int_to_ptr.vmem [resolvable:$true] %s188
          %194 = dma.hbm_to_vmem [thread:$0]  %s3, 1024, %s189, [#allocation13], 256, 256, 16
        $region20: #{tpu_custom_call.1} parent=11 // pred_fallthru
          _
      $region12: #{tpu_custom_call.1} parent=5 // pred_fallthru
        _
      %p195 = scmp.lt.s32.totalorder %s20, 2
      // Predicated region
      $region21: #{tpu_custom_call.1} parent=5 // pred_check
        %p196 = pneg %p195
      $region22: #{tpu_custom_call.1} parent=5 // pred_check_branch
        %198 = sbr.rel (%p196) target = $region24
      $region23: #{tpu_custom_call.1} parent=5 // pred_region
        // Predicated region
        $region25: #{tpu_custom_call.1} parent=23 // pred_check
          %p199 = pneg %p52
        $region26: #{tpu_custom_call.1} parent=23 // pred_check_branch
          %201 = sbr.rel (%p199) target = $region28
        $region27: #{tpu_custom_call.1} parent=23 // pred_region
          %s202 = sand.u32 %s42, 1
          %s203 = scalar_lea.sflag [#allocation7], %s202
          %s204 = sand.u32 %s42, 1
          %s205 = smul.addr %s204, 8
          %s206 = scalar_lea.vmem [#allocation6], %s205
          %s208 = ssub.s32 128, 128
          %209 = vsyncadd %s203, %s208
          %s210 = smul.addr %s27, 128
          %s211 = scalar_lea.hbm %s0, %s210
          %s213 = sshll.u32 %s206, 4
          %s214 = int_to_ptr.vmem [resolvable:$true] %s213
          %216 = dma.hbm_to_vmem [thread:$0]  %s211, 128, %s214, %s203
        $region28: #{tpu_custom_call.1} parent=23 // pred_fallthru
          _
        // Predicated region
        $region29: #{tpu_custom_call.1} parent=23 // pred_check
          %p217 = pneg %p80
        $region30: #{tpu_custom_call.1} parent=23 // pred_check_branch
          %219 = sbr.rel (%p217) target = $region32
        $region31: #{tpu_custom_call.1} parent=23 // pred_region
          %s220 = sand.u32 %s20, 1
          %s221 = scalar_lea.sflag [#allocation10], %s220
          %s222 = sand.u32 %s70, 1
          %s223 = smul.addr %s222, 8
          %s224 = scalar_lea.vmem [#allocation9], %s223
          %s226 = ssub.s32 128, 128
          %227 = vsyncadd %s221, %s226
          %s228 = sadd.s32 %s28, %s27
          %s229 = smul.addr %s228, 128
          %s230 = scalar_lea.hbm %s1, %s229
          %s232 = sshll.u32 %s224, 4
          %s233 = int_to_ptr.vmem [resolvable:$true] %s232
          %235 = dma.hbm_to_vmem [thread:$0]  %s230, 128, %s233, %s221
        $region32: #{tpu_custom_call.1} parent=23 // pred_fallthru
          _
      $region24: #{tpu_custom_call.1} parent=5 // pred_fallthru
        _
      %p236 = scmp.le.s32.totalorder 1, %s20
      %p237 = scmp.lt.s32.totalorder %s20, 3
      %p238 = pnand %p236, %p237
      %p239 = pneg %p238
      // Predicated region
      $region33: #{tpu_custom_call.1} parent=5 // pred_check
        _
      $region34: #{tpu_custom_call.1} parent=5 // pred_check_branch
        %241 = sbr.rel (%p238) target = $region36
      $region35: #{tpu_custom_call.1} parent=5 // pred_region
        %s242 = ssub.s32 %s20, 1
        %s243 = sand.u32 %s45, 1
        %s244 = scalar_lea.sflag [#allocation7], %s243
        %s245 = sand.u32 %s45, 1
        %s246 = smul.addr %s245, 8
        %s247 = scalar_lea.vmem [#allocation6], %s246
        // Predicated region
        $region37: #{tpu_custom_call.1} parent=35 // pred_check
          %p248 = pneg %p58
        $region38: #{tpu_custom_call.1} parent=35 // pred_check_branch
          %250 = sbr.rel (%p248) target = $region40
        $region39: #{tpu_custom_call.1} parent=35 // pred_region
          %251 = dma.done %s244, 128
        $region40: #{tpu_custom_call.1} parent=35 // pred_fallthru
          _
        %s252 = sand.u32 %s25, 1
        %s253 = scalar_lea.sflag [#allocation10], %s252
        %s254 = sand.u32 %s73, 1
        %s255 = smul.addr %s254, 8
        %s256 = scalar_lea.vmem [#allocation9], %s255
        // Predicated region
        $region41: #{tpu_custom_call.1} parent=35 // pred_check
          %p257 = pneg %p86
        $region42: #{tpu_custom_call.1} parent=35 // pred_check_branch
          %259 = sbr.rel (%p257) target = $region44
        $region43: #{tpu_custom_call.1} parent=35 // pred_region
          %260 = dma.done %s253, 128
        $region44: #{tpu_custom_call.1} parent=35 // pred_fallthru
          _
        // Predicated region
        $region45: #{tpu_custom_call.1} parent=35 // pred_check
          %p261 = pneg %p107
        $region46: #{tpu_custom_call.1} parent=35 // pred_check_branch
          %263 = sbr.rel (%p261) target = $region48
        $region47: #{tpu_custom_call.1} parent=35 // pred_region
          %264 = dma.done [#allocation10], 512
        $region48: #{tpu_custom_call.1} parent=35 // pred_fallthru
          _
        // Predicated region
        $region49: #{tpu_custom_call.1} parent=35 // pred_check
          %p265 = pneg %p128
        $region50: #{tpu_custom_call.1} parent=35 // pred_check_branch
          %267 = sbr.rel (%p265) target = $region52
        $region51: #{tpu_custom_call.1} parent=35 // pred_region
          %268 = dma.done [#allocation13], 1024
        $region52: #{tpu_custom_call.1} parent=35 // pred_fallthru
          _
        %s269 = sand.u32 %s45, 1
        %s270 = scalar_lea.sflag [#allocation7], %s269
        %s271 = sand.u32 %s45, 1
        %s272 = smul.addr %s271, 8
        %s273 = scalar_lea.vmem [#allocation6], %s272
        %p274 = pneg %p58
        %p275 = pneg %p55
        %s276 = sand.u32 %s25, 1
        %s277 = scalar_lea.sflag [#allocation10], %s276
        %s278 = sand.u32 %s73, 1
        %s279 = smul.addr %s278, 8
        %s280 = scalar_lea.vmem [#allocation9], %s279
        %p281 = pneg %p86
        %p282 = pneg %p83
        %p283 = pneg %p107
        %p284 = pneg %p104
        %p285 = pneg %p128
        %p286 = pneg %p125
        %p287 = pneg %p154
        %p288 = pneg %p151
        %s289 = sand.u32 %s141, 1
        %s290 = scalar_lea.sflag [#allocation8], %s289
        %s291 = sand.u32 %s141, 1
        %s292 = smul.addr %s291, 8
        %s293 = scalar_lea.vmem [#allocation14], %s292
        %p294 = scmp.eq.s32.totalorder %s30, 0
        // Predicated region
        $region53: #{tpu_custom_call.1} parent=35 // pred_check
          %p295 = pneg %p294
        $region54: #{tpu_custom_call.1} parent=35 // pred_check_branch
          %297 = sbr.rel (%p295) target = $region56
        $region55: #{tpu_custom_call.1} parent=35 // pred_region
          %v298 = vld [vmem:[%s247] sm:$0xff]
          %v299 = vld [vmem:[#allocation11] sm:$0xff]
          %v300 = vld [vmem:[#allocation11 + $0x8] sm:$0xff]
          %v301 = vld [vmem:[#allocation11 + $0x10] sm:$0xff]
          %v302 = vld [vmem:[#allocation11 + $0x18] sm:$0xff]
          %vm303 = vcmask 261120
          %v305 = vsel %vm303, %v298, 0
          %307 = vmatprep.subr.mxu0 0.0
          %308 = vmatpush1.msra.mxu0 0.0
          %309 = vmatprep.subr.mxu0 0.0
          %310 = vmatpush1.msra.mxu0 0.0
          %311 = vmatprep.subr.mxu0 0.0
          %312 = vmatpush1.msra.mxu0 0.0
          %313 = vmatprep.subr.mxu0 0.0
          %314 = vmatpush1.msra.mxu0 0.0
          %315 = vmatprep.subr.mxu0 0.0
          %316 = vmatpush1.msra.mxu0 0.0
          %317 = vmatprep.subr.mxu0 0.0
          %318 = vmatpush1.msra.mxu0 0.0
          %319 = vmatprep.subr.mxu0 0.0
          %320 = vmatpush1.msra.mxu0 0.0
          %321 = vmatprep.subr.mxu0 0.0
          %322 = vmatpush1.msra.mxu0 0.0
          %323 = vmatprep.subr.mxu0 0.0
          %324 = vmatpush1.msra.mxu0 0.0
          %325 = vmatprep.subr.mxu0 0.0
          %326 = vmatpush1.msra.mxu0 0.0
          %327 = vmatprep.subr.mxu0 0.0
          %328 = vmatpush1.msra.mxu0 0.0
          %329 = vmatprep.subr.mxu0 0.0
          %330 = vmatpush1.msra.mxu0 0.0
          %331 = vmatprep.subr.mxu0 0.0
          %332 = vmatpush1.msra.mxu0 %v302
          %333 = vmatprep.subr.mxu0 0.0
          %334 = vmatpush1.msra.mxu0 %v301
          %335 = vmatprep.subr.mxu0 0.0
          %336 = vmatpush1.msra.mxu0 %v300
          %337 = vmatprep.subr.mxu0 0.0
          %338 = vmatpush1.msra.mxu0 %v299
          %339 = vmatprep.subr.mxu0 0.0
          %340 = vmatpush2.msra.mxu0 0.0
          %341 = vmatprep.subr.mxu0 0.0
          %342 = vmatpush2.msra.mxu0 0.0
          %343 = vmatprep.subr.mxu0 0.0
          %344 = vmatpush2.msra.mxu0 0.0
          %345 = vmatprep.subr.mxu0 0.0
          %346 = vmatpush2.msra.mxu0 0.0
          %347 = vmatprep.subr.mxu0 0.0
          %348 = vmatpush2.msra.mxu0 0.0
          %349 = vmatprep.subr.mxu0 0.0
          %350 = vmatpush2.msra.mxu0 0.0
          %351 = vmatprep.subr.mxu0 0.0
          %352 = vmatpush2.msra.mxu0 0.0
          %353 = vmatprep.subr.mxu0 0.0
          %354 = vmatpush2.msra.mxu0 0.0
          %355 = vmatprep.subr.mxu0 0.0
          %356 = vmatpush2.msra.mxu0 0.0
          %357 = vmatprep.subr.mxu0 0.0
          %358 = vmatpush2.msra.mxu0 0.0
          %359 = vmatprep.subr.mxu0 0.0
          %360 = vmatpush2.msra.mxu0 0.0
          %361 = vmatprep.subr.mxu0 0.0
          %362 = vmatpush2.msra.mxu0 0.0
          %363 = vmatprep.subr.mxu0 0.0
          %364 = vmatpush2.msra.mxu0 0.0
          %365 = vmatprep.subr.mxu0 0.0
          %366 = vmatpush2.msra.mxu0 0.0
          %367 = vmatprep.subr.mxu0 0.0
          %368 = vmatpush2.msra.mxu0 0.0
          %369 = vmatprep.subr.mxu0 0.0
          %370 = vmatpush2.msra.mxu0 0.0
          %371 = vmatprep.mubr.f32.mxu0 0.0
          %372 = vmatmul.mubr.f32.gmra.mxu0 %v305
          %v373 = vpop.f32.mrf.mxu0
          %v374 = vadd.f32 0.0, %v373
          %v375 = vpop.f32.mrf.mxu0
          %376 = vdwg.mxu0
          %377 = vst [vmem:[#allocation2] sm:$0xff] %v374
          %vm378 = vcmask 7168
          %379 = vst.msk [vmem:[#allocation4] sm:$0xff] %vm378, -1e+30
          %380 = vst.msk [vmem:[#allocation5] sm:$0xff] %vm378, 0.0
          %381 = vst [vmem:[#allocation3] sm:$0xff] 0.0
        $region56: #{tpu_custom_call.1} parent=35 // pred_fallthru
          _
        %v382 = vld [vmem:[%s256] sm:$0xff]
        %v383 = vld [vmem:[#allocation12] sm:$0xff]
        %v384 = vld [vmem:[#allocation12 + $0x8] sm:$0xff]
        %v385 = vld [vmem:[#allocation12 + $0x10] sm:$0xff]
        %v386 = vld [vmem:[#allocation12 + $0x18] sm:$0xff]
        %v387 = vld [vmem:[#allocation12 + $0x20] sm:$0xff]
        %v388 = vld [vmem:[#allocation12 + $0x28] sm:$0xff]
        %v389 = vld [vmem:[#allocation12 + $0x30] sm:$0xff]
        %v390 = vld [vmem:[#allocation12 + $0x38] sm:$0xff]
        %vm391 = vcmask 261120
        %v393 = vsel %vm391, %v382, 0
        %395 = vmatprep.subr.mxu0 0.0
        %396 = vmatpush1.msra.mxu0 0.0
        %397 = vmatprep.subr.mxu0 0.0
        %398 = vmatpush1.msra.mxu0 0.0
        %399 = vmatprep.subr.mxu0 0.0
        %400 = vmatpush1.msra.mxu0 0.0
        %401 = vmatprep.subr.mxu0 0.0
        %402 = vmatpush1.msra.mxu0 0.0
        %403 = vmatprep.subr.mxu0 0.0
        %404 = vmatpush1.msra.mxu0 0.0
        %405 = vmatprep.subr.mxu0 0.0
        %406 = vmatpush1.msra.mxu0 0.0
        %407 = vmatprep.subr.mxu0 0.0
        %408 = vmatpush1.msra.mxu0 0.0
        %409 = vmatprep.subr.mxu0 0.0
        %410 = vmatpush1.msra.mxu0 0.0
        %411 = vmatprep.subr.mxu0 0.0
        %412 = vmatpush1.msra.mxu0 0.0
        %413 = vmatprep.subr.mxu0 0.0
        %414 = vmatpush1.msra.mxu0 0.0
        %415 = vmatprep.subr.mxu0 0.0
        %416 = vmatpush1.msra.mxu0 0.0
        %417 = vmatprep.subr.mxu0 0.0
        %418 = vmatpush1.msra.mxu0 0.0
        %419 = vmatprep.subr.mxu0 %v390
        %420 = vmatpush1.msra.mxu0 %v389
        %421 = vmatprep.subr.mxu0 %v388
        %422 = vmatpush1.msra.mxu0 %v387
        %423 = vmatprep.subr.mxu0 %v386
        %424 = vmatpush1.msra.mxu0 %v385
        %425 = vmatprep.subr.mxu0 %v384
        %426 = vmatpush1.msra.mxu0 %v383
        %427 = vmatprep.subr.mxu0 0.0
        %428 = vmatpush2.msra.mxu0 0.0
        %429 = vmatprep.subr.mxu0 0.0
        %430 = vmatpush2.msra.mxu0 0.0
        %431 = vmatprep.subr.mxu0 0.0
        %432 = vmatpush2.msra.mxu0 0.0
        %433 = vmatprep.subr.mxu0 0.0
        %434 = vmatpush2.msra.mxu0 0.0
        %435 = vmatprep.subr.mxu0 0.0
        %436 = vmatpush2.msra.mxu0 0.0
        %437 = vmatprep.subr.mxu0 0.0
        %438 = vmatpush2.msra.mxu0 0.0
        %439 = vmatprep.subr.mxu0 0.0
        %440 = vmatpush2.msra.mxu0 0.0
        %441 = vmatprep.subr.mxu0 0.0
        %442 = vmatpush2.msra.mxu0 0.0
        %443 = vmatprep.subr.mxu0 0.0
        %444 = vmatpush2.msra.mxu0 0.0
        %445 = vmatprep.subr.mxu0 0.0
        %446 = vmatpush2.msra.mxu0 0.0
        %447 = vmatprep.subr.mxu0 0.0
        %448 = vmatpush2.msra.mxu0 0.0
        %449 = vmatprep.subr.mxu0 0.0
        %450 = vmatpush2.msra.mxu0 0.0
        %451 = vmatprep.subr.mxu0 0.0
        %452 = vmatpush2.msra.mxu0 0.0
        %453 = vmatprep.subr.mxu0 0.0
        %454 = vmatpush2.msra.mxu0 0.0
        %455 = vmatprep.subr.mxu0 0.0
        %456 = vmatpush2.msra.mxu0 0.0
        %457 = vmatprep.subr.mxu0 0.0
        %458 = vmatpush2.msra.mxu0 0.0
        %459 = vmatprep.mubr.f32.mxu0 0.0
        %460 = vmatmul.mubr.f32.gmra.mxu0 %v393
        %v461 = vpop.f32.mrf.mxu0
        %v462 = vadd.f32 0.0, %v461
        %v463 = vpop.f32.mrf.mxu0
        %v464 = vadd.f32 0.0, %v463
        %465 = vdwg.mxu0
        %v466 = vld [vmem:[#allocation2] sm:$0xff]
        %467 = vmatprep.subr.mxu0 0.0
        %468 = vmatpush1.xpose.msra.mxu0 0.0
        %469 = vmatprep.subr.mxu0 0.0
        %470 = vmatpush1.xpose.msra.mxu0 0.0
        %471 = vmatprep.subr.mxu0 0.0
        %472 = vmatpush1.xpose.msra.mxu0 0.0
        %473 = vmatprep.subr.mxu0 0.0
        %474 = vmatpush1.xpose.msra.mxu0 0.0
        %475 = vmatprep.subr.mxu0 0.0
        %476 = vmatpush1.xpose.msra.mxu0 0.0
        %477 = vmatprep.subr.mxu0 0.0
        %478 = vmatpush1.xpose.msra.mxu0 0.0
        %479 = vmatprep.subr.mxu0 0.0
        %480 = vmatpush1.xpose.msra.mxu0 0.0
        %481 = vmatprep.subr.mxu0 0.0
        %482 = vmatpush1.xpose.msra.mxu0 0.0
        %483 = vmatprep.subr.mxu0 0.0
        %484 = vmatpush1.xpose.msra.mxu0 0.0
        %485 = vmatprep.subr.mxu0 0.0
        %486 = vmatpush1.xpose.msra.mxu0 0.0
        %487 = vmatprep.subr.mxu0 0.0
        %488 = vmatpush1.xpose.msra.mxu0 0.0
        %489 = vmatprep.subr.mxu0 0.0
        %490 = vmatpush1.xpose.msra.mxu0 0.0
        %491 = vmatprep.subr.mxu0 0.0
        %492 = vmatpush1.xpose.msra.mxu0 0.0
        %493 = vmatprep.subr.mxu0 0.0
        %494 = vmatpush1.xpose.msra.mxu0 0.0
        %495 = vmatprep.subr.mxu0 0.0
        %496 = vmatpush1.xpose.msra.mxu0 0.0
        %497 = vmatprep.subr.mxu0 0.0
        %498 = vmatpush1.xpose.msra.mxu0 %v462
        %499 = vmatprep.subr.mxu0 0.0
        %500 = vmatpush2.xpose.msra.mxu0 0.0
        %501 = vmatprep.subr.mxu0 0.0
        %502 = vmatpush2.xpose.msra.mxu0 0.0
        %503 = vmatprep.subr.mxu0 0.0
        %504 = vmatpush2.xpose.msra.mxu0 0.0
        %505 = vmatprep.subr.mxu0 0.0
        %506 = vmatpush2.xpose.msra.mxu0 0.0
        %507 = vmatprep.subr.mxu0 0.0
        %508 = vmatpush2.xpose.msra.mxu0 0.0
        %509 = vmatprep.subr.mxu0 0.0
        %510 = vmatpush2.xpose.msra.mxu0 0.0
        %511 = vmatprep.subr.mxu0 0.0
        %512 = vmatpush2.xpose.msra.mxu0 0.0
        %513 = vmatprep.subr.mxu0 0.0
        %514 = vmatpush2.xpose.msra.mxu0 0.0
        %515 = vmatprep.subr.mxu0 0.0
        %516 = vmatpush2.xpose.msra.mxu0 0.0
        %517 = vmatprep.subr.mxu0 0.0
        %518 = vmatpush2.xpose.msra.mxu0 0.0
        %519 = vmatprep.subr.mxu0 0.0
        %520 = vmatpush2.xpose.msra.mxu0 0.0
        %521 = vmatprep.subr.mxu0 0.0
        %522 = vmatpush2.xpose.msra.mxu0 0.0
        %523 = vmatprep.subr.mxu0 0.0
        %524 = vmatpush2.xpose.msra.mxu0 0.0
        %525 = vmatprep.subr.mxu0 0.0
        %526 = vmatpush2.xpose.msra.mxu0 0.0
        %527 = vmatprep.subr.mxu0 0.0
        %528 = vmatpush2.xpose.msra.mxu0 0.0
        %529 = vmatprep.subr.mxu0 0.0
        %530 = vmatpush2.xpose.msra.mxu0 0.0
        %531 = vmatprep.mubr.f32.mxu0 0.0
        %532 = vmatmul.mubr.f32.gmra.mxu0 %v466
        %v533 = vpop.f32.mrf.mxu0
        %v534 = vadd.f32 0.0, %v533
        %v535 = vpop.f32.mrf.mxu0
        %536 = vdwg.mxu0
        %v537 = vlaneseq
        %v538 = vshrl.u32 %v537, 7
        %v539 = vlaneseq
        %v540 = vand.u32 %v539, 127
        %s541 = smul.u32 %s30, 8
        %v542 = vstv %s541
        %v543 = vadd.s32 %v540, %v542
        %vm544 = vcmp.le.s32.totalorder %v543, %v538
        %v545 = vsel %vm544, %v534, -1e+30
        %v546 = vld [vmem:[#allocation4] sm:$0xff]
        %vm547 = vcmask 64512
        %v548 = vsel %vm547, %v545, -inf
        %549 = vmax.xlane.f32.xlu0 %v548
        %v550 = vpop.xlane.xlu0 %549
        %v551 = vmax.f32 %v546, %v550
        %v552 = vsub.f32 %v546, %v551
        %v553 = vmul.f32 %v552, 1.442695
        %v554 = vpow.pop %v553
        %556 = vset.pattern.permute.xlu0 0
        %557 = vperm.xlu0 %556, %v551
        %v558 = vpop.permute.xlu0 %557
        %v560 = vsub.f32 %v545, %v558
        %v561 = vmul.f32 %v560, 1.442695
        %v562 = vpow.pop %v561
        %v563 = vld [vmem:[#allocation5] sm:$0xff]
        %v564 = vmul.f32 %v554, %v563
        %v565 = vsel %vm547, %v562, 0.0
        %566 = vadd.xlane.f32.xlu0 %v565
        %v567 = vpop.xlane.xlu0 %566
        %v568 = vadd.f32 %v564, %v567
        %vm569 = vcmask 7168
        %570 = vst.msk [vmem:[#allocation5] sm:$0xff] %vm569, %v568
        %v571 = vld [vmem:[#allocation3] sm:$0xff]
        %573 = vset.pattern.permute.xlu0 0
        %574 = vperm.xlu0 %573, %v554
        %v575 = vpop.permute.xlu0 %574
        %v577 = vmul.f32 %v575, %v571
        %v579 = vsel %vm547, %v562, 0
        %581 = vmatprep.subr.mxu0 0.0
        %582 = vmatpush1.msra.mxu0 0.0
        %583 = vmatprep.subr.mxu0 0.0
        %584 = vmatpush1.msra.mxu0 0.0
        %585 = vmatprep.subr.mxu0 0.0
        %586 = vmatpush1.msra.mxu0 0.0
        %587 = vmatprep.subr.mxu0 0.0
        %588 = vmatpush1.msra.mxu0 0.0
        %589 = vmatprep.subr.mxu0 0.0
        %590 = vmatpush1.msra.mxu0 0.0
        %591 = vmatprep.subr.mxu0 0.0
        %592 = vmatpush1.msra.mxu0 0.0
        %593 = vmatprep.subr.mxu0 0.0
        %594 = vmatpush1.msra.mxu0 0.0
        %595 = vmatprep.subr.mxu0 0.0
        %596 = vmatpush1.msra.mxu0 0.0
        %597 = vmatprep.subr.mxu0 0.0
        %598 = vmatpush1.msra.mxu0 0.0
        %599 = vmatprep.subr.mxu0 0.0
        %600 = vmatpush1.msra.mxu0 0.0
        %601 = vmatprep.subr.mxu0 0.0
        %602 = vmatpush1.msra.mxu0 0.0
        %603 = vmatprep.subr.mxu0 0.0
        %604 = vmatpush1.msra.mxu0 0.0
        %605 = vmatprep.subr.mxu0 0.0
        %606 = vmatpush1.msra.mxu0 0.0
        %607 = vmatprep.subr.mxu0 0.0
        %608 = vmatpush1.msra.mxu0 0.0
        %609 = vmatprep.subr.mxu0 0.0
        %610 = vmatpush1.msra.mxu0 0.0
        %611 = vmatprep.subr.mxu0 0.0
        %612 = vmatpush1.msra.mxu0 %v464
        %613 = vmatprep.subr.mxu0 0.0
        %614 = vmatpush2.msra.mxu0 0.0
        %615 = vmatprep.subr.mxu0 0.0
        %616 = vmatpush2.msra.mxu0 0.0
        %617 = vmatprep.subr.mxu0 0.0
        %618 = vmatpush2.msra.mxu0 0.0
        %619 = vmatprep.subr.mxu0 0.0
        %620 = vmatpush2.msra.mxu0 0.0
        %621 = vmatprep.subr.mxu0 0.0
        %622 = vmatpush2.msra.mxu0 0.0
        %623 = vmatprep.subr.mxu0 0.0
        %624 = vmatpush2.msra.mxu0 0.0
        %625 = vmatprep.subr.mxu0 0.0
        %626 = vmatpush2.msra.mxu0 0.0
        %627 = vmatprep.subr.mxu0 0.0
        %628 = vmatpush2.msra.mxu0 0.0
        %629 = vmatprep.subr.mxu0 0.0
        %630 = vmatpush2.msra.mxu0 0.0
        %631 = vmatprep.subr.mxu0 0.0
        %632 = vmatpush2.msra.mxu0 0.0
        %633 = vmatprep.subr.mxu0 0.0
        %634 = vmatpush2.msra.mxu0 0.0
        %635 = vmatprep.subr.mxu0 0.0
        %636 = vmatpush2.msra.mxu0 0.0
        %637 = vmatprep.subr.mxu0 0.0
        %638 = vmatpush2.msra.mxu0 0.0
        %639 = vmatprep.subr.mxu0 0.0
        %640 = vmatpush2.msra.mxu0 0.0
        %641 = vmatprep.subr.mxu0 0.0
        %642 = vmatpush2.msra.mxu0 0.0
        %643 = vmatprep.subr.mxu0 0.0
        %644 = vmatpush2.msra.mxu0 0.0
        %645 = vmatprep.mubr.f32.mxu0 0.0
        %646 = vmatmul.mubr.f32.gmra.mxu0 %v579
        %v647 = vpop.f32.mrf.mxu0
        %v648 = vadd.f32 0.0, %v647
        %v649 = vpop.f32.mrf.mxu0
        %650 = vdwg.mxu0
        %v651 = vadd.f32 %v577, %v648
        %652 = vst [vmem:[#allocation3] sm:$0xff] %v651
        %653 = vst.msk [vmem:[#allocation4] sm:$0xff] %vm569, %v551
        // Predicated region
        $region57: #{tpu_custom_call.1} parent=35 // pred_check
          %p654 = pneg %p294
        $region58: #{tpu_custom_call.1} parent=35 // pred_check_branch
          %656 = sbr.rel (%p654) target = $region60
        $region59: #{tpu_custom_call.1} parent=35 // pred_region
          %v657 = vld [vmem:[#allocation3] sm:$0xff]
          %v658 = vld [vmem:[#allocation5] sm:$0xff]
          %v659 = vrcp.pop %v658
          %661 = vset.pattern.permute.xlu0 0
          %662 = vperm.xlu0 %661, %v659
          %v663 = vpop.permute.xlu0 %662
          %v665 = vmul.f32 %v657, %v663
          %666 = vst [vmem:[%s293] sm:$0xff] %v665
        $region60: #{tpu_custom_call.1} parent=35 // pred_fallthru
          _
        %s667 = sand.u32 %s141, 1
        %s668 = scalar_lea.sflag [#allocation8], %s667
        %s669 = sand.u32 %s141, 1
        %s670 = smul.addr %s669, 8
        %s671 = scalar_lea.vmem [#allocation14], %s670
        // Predicated region
        $region61: #{tpu_custom_call.1} parent=35 // pred_check
          %p672 = pneg %p151
        $region62: #{tpu_custom_call.1} parent=35 // pred_check_branch
          %674 = sbr.rel (%p672) target = $region64
        $region63: #{tpu_custom_call.1} parent=35 // pred_region
          %s676 = ssub.s32 128, 128
          %677 = vsyncadd %s668, %s676
          %s678 = smul.addr %s29, 128
          %s679 = scalar_lea.hbm %s4, %s678
          %s681 = sshll.u32 %s671, 4
          %s682 = int_to_ptr.vmem [resolvable:$true] %s681
          %684 = dma.vmem_to_hbm [thread:$0]  %s682, 128, %s679, %s668
        $region64: #{tpu_custom_call.1} parent=35 // pred_fallthru
          _
      $region36: #{tpu_custom_call.1} parent=5 // pred_fallthru
        _
      %p685 = scmp.le.s32.totalorder 2, %s20
      // Predicated region
      $region65: #{tpu_custom_call.1} parent=5 // pred_check
        %p686 = pneg %p685
      $region66: #{tpu_custom_call.1} parent=5 // pred_check_branch
        %688 = sbr.rel (%p686) target = $region68
      $region67: #{tpu_custom_call.1} parent=5 // pred_region
        %s689 = ssub.s32 %s20, 2
        // Predicated region
        $region69: #{tpu_custom_call.1} parent=67 // pred_check
          %p690 = pneg %p157
        $region70: #{tpu_custom_call.1} parent=67 // pred_check_branch
          %692 = sbr.rel (%p690) target = $region72
        $region71: #{tpu_custom_call.1} parent=67 // pred_region
          %s693 = sand.u32 %s142, 1
          %s694 = scalar_lea.sflag [#allocation8], %s693
          %s695 = sand.u32 %s142, 1
          %s696 = smul.addr %s695, 8
          %s697 = scalar_lea.vmem [#allocation14], %s696
          %698 = dma.done %s694, 128
        $region72: #{tpu_custom_call.1} parent=67 // pred_fallthru
          _
      $region68: #{tpu_custom_call.1} parent=5 // pred_fallthru
        _
    $region6: #{tpu_custom_call.1} parent=1 // loop_footer
      %s24 = sadd.s32 1, %s20
    $region7: #{tpu_custom_call.1} parent=1 // loop_footer_branch
      %19 = sbr.rel target = $region3
    $region8: #{tpu_custom_call.1} parent=1 // loop_exit
      _
    %699 = vsyncpa [#allocation7], 1
    %s700 = scalar_lea.sflag [#allocation7], 1
    %701 = vsyncpa %s700, 1
    %702 = vsyncpa [#allocation10], 1
    %s703 = scalar_lea.sflag [#allocation10], 1
    %704 = vsyncpa %s703, 1
    %705 = vsyncpa [#allocation13], 1
    %706 = vsyncpa [#allocation8], 1
    %s707 = scalar_lea.sflag [#allocation8], 1
    %708 = vsyncpa %s707, 1

</llo_original>
